<compile_context>
chip_gen: v5e
topology: v5e:2x2
jax: 0.10.0
libtpu: 0.0.40
codegen_flags: <defaults>
</compile_context>

<pallas_src>
import math
import functools

import jax
import jax.numpy as jnp
from jax.experimental import pallas as pl
from jax.experimental.pallas import tpu as pltpu


def _ffn_kernel(x_ref, w1_ref, b1_ref, w2_ref, b2_ref, o_ref, acc_ref, *,
                approximate_gelu):
    # x_ref: (TM, dim), w1_ref: (dim, TN), b1_ref: (1, TN)
    # w2_ref: (TN, dim), b2_ref: (1, dim), o_ref: (TM, dim), acc_ref: (TM, dim) f32
    j = pl.program_id(1)

    @pl.when(j == 0)
    def _():
        # Seed the accumulator with the second bias (keeps the finalize step lean).
        acc_ref[...] = jnp.broadcast_to(b2_ref[...].astype(jnp.float32),
                                        acc_ref.shape)

    x = x_ref[...]

    # First linear (hidden tile): h = x @ W1[:, tile] + b1[tile]   (MXU, f32 accumulate)
    h = jnp.dot(x, w1_ref[...], preferred_element_type=jnp.float32) + b1_ref[...]

    if approximate_gelu:
        # tanh-approx GELU: transcendental runs on the EUP (own VLIW slot, ~free).
        h = 0.5 * h * (1.0 + jnp.tanh(0.7978845608028654 * (h + 0.044715 * h * h * h)))
    else:
        # Exact (erf-based) GELU, matching torch.nn.GELU() default.
        h = 0.5 * h * (1.0 + jax.lax.erf(h * (1.0 / math.sqrt(2.0))))

    # Second linear partial product: acc += GELU(h) @ W2[tile, :]
    acc_ref[...] += jnp.dot(h.astype(w2_ref.dtype), w2_ref[...],
                            preferred_element_type=jnp.float32)

    @pl.when(j == pl.num_programs(1) - 1)
    def _():
        o_ref[...] = acc_ref[...].astype(o_ref.dtype)


def _pick_block(total, target, align):
    """Largest divisor of `total` that is <= target and a multiple of `align`
    (falls back to `total` itself, i.e. a single block)."""
    if total <= target:
        return total
    b = (target // align) * align
    while b >= align:
        if total % b == 0:
            return b
        b -= align
    return total


def _device_config():
    """Per-TPU-generation knobs: (vmem_budget_bytes, target_tm, target_tn, is_v7)."""
    kind = ""
    try:
        kind = jax.devices()[0].device_kind.lower()
    except Exception:
        pass
    vmem_cap = 128 * 1024 * 1024
    try:
        vmem_cap = int(pltpu.get_tpu_info().vmem_capacity_bytes)
    except Exception:
        pass
    is_v7 = ("v7" in kind) or (vmem_cap <= 64 * 1024 * 1024)
    if is_v7:
        # v7x: 64 MiB physical per TC -> never request it all; TN=256 matches 2x256x256 MXU.
        return int(0.8 * vmem_cap), 512, 256, True
    if "v5" in kind:
        # v5e: 128 MiB physical; AI target ~240 (bf16) so TM~512 reaches roofline.
        return min(int(0.85 * vmem_cap), 104 * 1024 * 1024), 512, 512, False
    # v6e (and default): 128 MiB physical; bigger TM *and* TN (fewer accumulator passes).
    return min(int(0.85 * vmem_cap), 108 * 1024 * 1024), 768, 1024, False


def _fit_tiles(M, dim, hidden, act_itemsize, w_itemsize, budget,
               target_tm, target_tn, sublane_align, is_v7):
    tn = _pick_block(hidden, target_tn, 128)
    tm = _pick_block(M, target_tm, sublane_align)

    def residency(tm_, tn_):
        return (2 * tm_ * dim * act_itemsize                 # x tile (double-buffered)
                + 2 * tm_ * dim * act_itemsize               # out tile (double-buffered)
                + tm_ * dim * 4                              # f32 accumulator scratch
                + 2 * (dim * tn_ + tn_ * dim) * w_itemsize   # W1+W2 tiles (double-buffered)
                + 2 * (tn_ + dim) * w_itemsize)              # biases

    # Shrink tiles (TN first on VMEM pressure, then TM) until residency fits the budget.
    while residency(tm, tn) > budget:
        if tn > 128:
            new_tn = _pick_block(hidden, max(tn // 2, 128), 128)
            if new_tn < tn:
                tn = new_tn
                continue
        if tm > sublane_align:
            new_tm = _pick_block(M, max(tm // 2, sublane_align), sublane_align)
            if new_tm < tm:
                tm = new_tm
                continue
        break  # awkward shapes: cannot shrink further, let the compiler cope
        # TODO(synk): pl.cdiv grid with masked tail for M/hidden without aligned divisors.

    # v7x: the "parallel" M axis shards across 2 TensorCores -- ensure >= 2 M-tiles.
    if is_v7 and (M // tm) < 2 and M >= 2 * sublane_align:
        new_tm = _pick_block(M, M // 2, sublane_align)
        if new_tm < tm and M % new_tm == 0:
            tm = new_tm

    return tm, tn, residency(tm, tn)


@functools.partial(jax.jit, static_argnames=("block_m", "block_n", "approximate_gelu"))
def feed_forward(x, w1, b1, w2, b2, *, block_m=None, block_n=None,
                 approximate_gelu=False):
    """x: (B, S, dim) -> (B, S, dim). Fused MLP in a single Pallas kernel."""
    B, S, dim = x.shape
    hidden = w1.shape[1]
    M = B * S

    act_itemsize = jnp.dtype(x.dtype).itemsize
    w_itemsize = jnp.dtype(w1.dtype).itemsize
    # Sublane packing alignment for the row tile: 8 (f32) / 16 (bf16) / 32 (int8/fp8).
    sublane_align = max(8, 32 // act_itemsize)

    budget, tgt_tm, tgt_tn, is_v7 = _device_config()
    if block_m is not None:
        tgt_tm = block_m
    if block_n is not None:
        tgt_tn = block_n

    tm, tn, resident_bytes = _fit_tiles(M, dim, hidden, act_itemsize, w_itemsize,
                                        budget, tgt_tm, tgt_tn, sublane_align, is_v7)
    assert M % tm == 0 and hidden % tn == 0

    # VMEM limit = actual residency + 25% headroom, never the full physical VMEM (v7x).
    vmem_limit = int(min(max(int(1.25 * resident_bytes), 16 * 1024 * 1024), budget))

    x2 = x.reshape(M, dim)
    b1_2 = b1.reshape(1, hidden)
    b2_2 = b2.reshape(1, dim)

    n_m_tiles = M // tm
    cost = pl.CostEstimate(
        flops=4 * M * dim * hidden,                 # two matmuls: 2*M*dim*hidden each
        transcendentals=M * hidden,                 # one erf/tanh per hidden activation
        bytes_accessed=int(
            (x2.size + M * dim) * act_itemsize      # activations in + out
            + n_m_tiles * (w1.size + w2.size + b1.size) * w_itemsize  # weights re-streamed
            + b2.size * w_itemsize),
    )

    kernel = functools.partial(_ffn_kernel, approximate_gelu=approximate_gelu)

    out2 = pl.pallas_call(
        kernel,
        out_shape=jax.ShapeDtypeStruct((M, dim), x.dtype),
        grid_spec=pltpu.PrefetchScalarGridSpec(
            num_scalar_prefetch=0,
            grid=(M // tm, hidden // tn),
            in_specs=[
                pl.BlockSpec((tm, dim), lambda i, j: (i, 0)),    # x rows (same across j)
                pl.BlockSpec((dim, tn), lambda i, j: (0, j)),    # W1 hidden tile (streamed)
                pl.BlockSpec((1, tn), lambda i, j: (0, j)),      # b1 tile
                pl.BlockSpec((tn, dim), lambda i, j: (j, 0)),    # W2 hidden tile (streamed)
                pl.BlockSpec((1, dim), lambda i, j: (0, 0)),     # b2 (resident)
            ],
            out_specs=pl.BlockSpec((tm, dim), lambda i, j: (i, 0)),
            scratch_shapes=[pltpu.VMEM((tm, dim), jnp.float32)],
        ),
        compiler_params=pltpu.CompilerParams(
            dimension_semantics=("parallel", "arbitrary"),
            vmem_limit_bytes=vmem_limit,
        ),
        cost_estimate=cost,
    )(x2, w1, b1_2, w2, b2_2)

    return out2.reshape(B, S, dim)


def _reference(x, w1, b1, w2, b2):
    h = jnp.dot(x, w1) + b1
    h = 0.5 * h * (1.0 + jax.lax.erf(h / jnp.sqrt(2.0).astype(h.dtype)))
    return jnp.dot(h, w2) + b2


if __name__ == "__main__":
    # Small but lane-dense shapes (dim/hidden multiples of 128 -> unmasked vector stores).
    B, S, dim, hidden = 2, 16, 128, 256

    key = jax.random.PRNGKey(0)
    kx, k1, k2, k3, k4 = jax.random.split(key, 5)

    # Deterministic parameter init (PyTorch-style uniform bounds).
    bound1 = 1.0 / math.sqrt(dim)
    bound2 = 1.0 / math.sqrt(hidden)
    w1 = jax.random.uniform(k1, (dim, hidden), jnp.float32, -bound1, bound1)
    b1 = jax.random.uniform(k2, (hidden,), jnp.float32, -bound1, bound1)
    w2 = jax.random.uniform(k3, (hidden, dim), jnp.float32, -bound2, bound2)
    b2 = jax.random.uniform(k4, (dim,), jnp.float32, -bound2, bound2)

    x = jax.random.normal(kx, (B, S, dim), jnp.float32)

    out = feed_forward(x, w1, b1, w2, b2)
    out = jax.block_until_ready(out)

    ref = _reference(x, w1, b1, w2, b2)
    assert out.shape == (B, S, dim)
    assert jnp.allclose(out, ref, atol=1e-4, rtol=1e-4), float(jnp.abs(out - ref).max())

    print("KERNEL_OK")
</pallas_src>

<mosaic_0001>
module attributes {stable_mosaic.version = 11 : i64} {
  func.func @_ffn_kernel(%arg0: i32, %arg1: i32, %arg2: memref<32x128xf32, #tpu.memory_space<vmem>>, %arg3: memref<128x256xf32, #tpu.memory_space<vmem>>, %arg4: memref<1x256xf32, #tpu.memory_space<vmem>>, %arg5: memref<256x128xf32, #tpu.memory_space<vmem>>, %arg6: memref<1x128xf32, #tpu.memory_space<vmem>>, %arg7: memref<32x128xf32, #tpu.memory_space<vmem>>, %arg8: memref<32x128xf32, #tpu.memory_space<vmem>>) attributes {dimension_semantics = [#tpu.dimension_semantics<parallel>, #tpu.dimension_semantics<arbitrary>], iteration_bounds = array<i64: 1, 1>, scalar_prefetch = 0 : i64, scratch_operands = 1 : i64, tpu.core_type = #tpu.core_type<tc>, window_params = [{transform_indices = @transform_0, window_bounds = array<i64: 32, 128>}, {transform_indices = @transform_1, window_bounds = array<i64: 128, 256>}, {transform_indices = @transform_2, window_bounds = array<i64: 1, 256>}, {transform_indices = @transform_3, window_bounds = array<i64: 256, 128>}, {pipeline_mode = #tpu.pipeline_mode<synchronous>, transform_indices = @transform_4, window_bounds = array<i64: 1, 128>}, {transform_indices = @transform_5, window_bounds = array<i64: 32, 128>}]} {
    %c0_i32 = arith.constant 0 : i32
    %0 = arith.cmpi eq, %arg1, %c0_i32 : i32
    %1 = arith.extui %0 : i1 to i32
    %c0_i32_0 = arith.constant 0 : i32
    %2 = arith.cmpi ne, %1, %c0_i32_0 : i32
    scf.if %2 {
      %c0_18 = arith.constant 0 : index
      %c0_19 = arith.constant 0 : index
      %25 = vector.load %arg6[%c0_18, %c0_19] : memref<1x128xf32, #tpu.memory_space<vmem>>, vector<1x128xf32>
      %26 = vector.shape_cast %25 : vector<1x128xf32> to vector<1x128xf32>
      %27 = vector.broadcast %26 : vector<1x128xf32> to vector<32x128xf32>
      %c0_20 = arith.constant 0 : index
      %c0_21 = arith.constant 0 : index
      %28 = vector.load %arg8[%c0_20, %c0_21] : memref<32x128xf32, #tpu.memory_space<vmem>>, vector<32x128xf32>
      tpu.vector_store %arg8[%c0_20, %c0_21], %27 {strides = array<i32>} : memref<32x128xf32, #tpu.memory_space<vmem>>, vector<32x128xf32>,
    } else {
    }
    %c0 = arith.constant 0 : index
    %c0_1 = arith.constant 0 : index
    %3 = vector.load %arg2[%c0, %c0_1] : memref<32x128xf32, #tpu.memory_space<vmem>>, vector<32x128xf32>
    %c0_2 = arith.constant 0 : index
    %c0_3 = arith.constant 0 : index
    %4 = vector.load %arg3[%c0_2, %c0_3] : memref<128x256xf32, #tpu.memory_space<vmem>>, vector<128x256xf32>
    %cst = arith.constant dense<0.000000e+00> : vector<32x256xf32>
    %5 = tpu.matmul %3, %4, %cst {dimension_numbers = #tpu.dot_dimension_numbers<[1], [0], [0], [1], [0, 0, 1, 1], [], []>} : vector<32x128xf32>, vector<128x256xf32>, vector<32x256xf32> -> vector<32x256xf32>
    %c0_4 = arith.constant 0 : index
    %c0_5 = arith.constant 0 : index
    %6 = vector.load %arg4[%c0_4, %c0_5] : memref<1x256xf32, #tpu.memory_space<vmem>>, vector<1x256xf32>
    %7 = vector.broadcast %6 : vector<1x256xf32> to vector<32x256xf32>
    %8 = arith.addf %5, %7 : vector<32x256xf32>
    %cst_6 = arith.constant 5.000000e-01 : f32
    %9 = vector.broadcast %cst_6 : f32 to vector<32x256xf32>
    %10 = arith.mulf %9, %8 : vector<32x256xf32>
    %cst_7 = arith.constant 0.707106769 : f32
    %11 = vector.broadcast %cst_7 : f32 to vector<32x256xf32>
    %12 = arith.mulf %8, %11 : vector<32x256xf32>
    %13 = math.erf %12 : vector<32x256xf32>
    %cst_8 = arith.constant 1.000000e+00 : f32
    %14 = vector.broadcast %cst_8 : f32 to vector<32x256xf32>
    %15 = arith.addf %14, %13 : vector<32x256xf32>
    %16 = arith.mulf %10, %15 : vector<32x256xf32>
    %c0_9 = arith.constant 0 : index
    %c0_10 = arith.constant 0 : index
    %17 = vector.load %arg8[%c0_9, %c0_10] : memref<32x128xf32, #tpu.memory_space<vmem>>, vector<32x128xf32>
    %c0_11 = arith.constant 0 : index
    %c0_12 = arith.constant 0 : index
    %18 = vector.load %arg5[%c0_11, %c0_12] : memref<256x128xf32, #tpu.memory_space<vmem>>, vector<256x128xf32>
    %cst_13 = arith.constant dense<0.000000e+00> : vector<32x128xf32>
    %19 = tpu.matmul %16, %18, %cst_13 {dimension_numbers = #tpu.dot_dimension_numbers<[1], [0], [0], [1], [0, 0, 1, 1], [], []>} : vector<32x256xf32>, vector<256x128xf32>, vector<32x128xf32> -> vector<32x128xf32>
    %20 = arith.addf %17, %19 : vector<32x128xf32>
    %c0_14 = arith.constant 0 : index
    %c0_15 = arith.constant 0 : index
    %21 = vector.load %arg8[%c0_14, %c0_15] : memref<32x128xf32, #tpu.memory_space<vmem>>, vector<32x128xf32>
    tpu.vector_store %arg8[%c0_14, %c0_15], %20 {strides = array<i32>} : memref<32x128xf32, #tpu.memory_space<vmem>>, vector<32x128xf32>,
    %c0_i32_16 = arith.constant 0 : i32
    %22 = arith.cmpi eq, %arg1, %c0_i32_16 : i32
    %23 = arith.extui %22 : i1 to i32
    %c0_i32_17 = arith.constant 0 : i32
    %24 = arith.cmpi ne, %23, %c0_i32_17 : i32
    scf.if %24 {
      %c0_18 = arith.constant 0 : index
      %c0_19 = arith.constant 0 : index
      %25 = vector.load %arg8[%c0_18, %c0_19] : memref<32x128xf32, #tpu.memory_space<vmem>>, vector<32x128xf32>
      %c0_20 = arith.constant 0 : index
      %c0_21 = arith.constant 0 : index
      %26 = vector.load %arg7[%c0_20, %c0_21] : memref<32x128xf32, #tpu.memory_space<vmem>>, vector<32x128xf32>
      tpu.vector_store %arg7[%c0_20, %c0_21], %25 {strides = array<i32>} : memref<32x128xf32, #tpu.memory_space<vmem>>, vector<32x128xf32>,
    } else {
    }
    return
  }
  func.func @transform_0(%arg0: i32, %arg1: i32) -> (i32, i32) {
    %c0_i32 = arith.constant 0 : i32
    %c0_i32_0 = arith.constant 0 : i32
    return %arg0, %c0_i32 : i32, i32
  }
  func.func @transform_1(%arg0: i32, %arg1: i32) -> (i32, i32) {
    %c0_i32 = arith.constant 0 : i32
    %c0_i32_0 = arith.constant 0 : i32
    return %c0_i32, %arg1 : i32, i32
  }
  func.func @transform_2(%arg0: i32, %arg1: i32) -> (i32, i32) {
    %c0_i32 = arith.constant 0 : i32
    %c0_i32_0 = arith.constant 0 : i32
    return %c0_i32, %arg1 : i32, i32
  }
  func.func @transform_3(%arg0: i32, %arg1: i32) -> (i32, i32) {
    %c0_i32 = arith.constant 0 : i32
    %c0_i32_0 = arith.constant 0 : i32
    return %arg1, %c0_i32 : i32, i32
  }
  func.func @transform_4(%arg0: i32, %arg1: i32) -> (i32, i32) {
    %c0_i32 = arith.constant 0 : i32
    %c0_i32_0 = arith.constant 0 : i32
    %c0_i32_1 = arith.constant 0 : i32
    return %c0_i32, %c0_i32_0 : i32, i32
  }
  func.func @transform_5(%arg0: i32, %arg1: i32) -> (i32, i32) {
    %c0_i32 = arith.constant 0 : i32
    %c0_i32_0 = arith.constant 0 : i32
    return %arg0, %c0_i32 : i32, i32
  }
}

</mosaic_0001>

<llo_original>
// kernel: feed_forward.1
$region0: #{feed_forward.1}
  #allocation0 [shape = 'u32[]', space=smem, size = 0x4, offset = 0x4, fixed_abs, tag = 'smem constant byte address 0x4 - core index']
  #allocation1 [shape = 'u32[72,128]{1,0:T(1,128)}', space=vmem, size = 0x9000, scoped, tag = 'internal scratch']
  #allocation2 [shape = 'f32[32,128]{1,0:T(8,128)}', space=vmem, size = 0x4000, scoped, tag = 'scratch operand']
  %s0 = inlined_call_operand.hbm [shape: f32[32,128], index: 0, kind: input, shape index: {}]
  %s1 = inlined_call_operand.hbm [shape: f32[128,256], index: 1, kind: input, shape index: {}]
  %s2 = inlined_call_operand.vmem [shape: f32[1,256], index: 2, kind: input, shape index: {}]
  %s3 = inlined_call_operand.hbm [shape: f32[256,128], index: 3, kind: input, shape index: {}]
  %s4 = inlined_call_operand.vmem [shape: f32[1,128], index: 4, kind: input, shape index: {}]
  %s5 = inlined_call_operand.hbm [shape: f32[32,128], index: 5, kind: output, shape index: {}]
  %s6 = sld [smem:[#allocation0]]
  $region50: #{feed_forward.1} parent=0
    _
  %s8 = ssub.s32 1, %s6
  %s9 = scalar_select 0, %s8, %s6
  $region1: #{feed_forward.1} parent=0
    #allocation3 [shape = 'u8[16384]{0}', space=vmem, size = 0x4000, scoped, tag = 'input window, operand 0, single buffered']
    #allocation4 [shape = 's32[1]{0}', space=sflag, size = 0x4, scoped, tag = 'scoped memory for feed_forward.1']
    #allocation5 [shape = 's32[1]{0}', space=sflag, size = 0x4, scoped, tag = 'scoped memory for feed_forward.1']
    #allocation6 [shape = 'u8[131072]{0}', space=vmem, size = 0x20000, scoped, tag = 'input window, operand 1, single buffered']
    #allocation7 [shape = 's32[1]{0}', space=sflag, size = 0x4, scoped, tag = 'scoped memory for feed_forward.1']
    #allocation8 [shape = 'u8[131072]{0}', space=vmem, size = 0x20000, scoped, tag = 'input window, operand 3, single buffered']
    #allocation9 [shape = 'u8[16384]{0}', space=vmem, size = 0x4000, scoped, tag = 'output window, operand 0, single buffered']
    %10 = vsyncpa [#allocation4], 0
    %11 = vsyncpa [#allocation7], 0
    %12 = vsyncpa [#allocation5], 0
    // Predicated region
    $region2: #{feed_forward.1} parent=1 // pred_check
      _
    $region3: #{feed_forward.1} parent=1 // pred_check_branch
      %14 = sbr.rel (0) target = $region5
    $region4: #{feed_forward.1} parent=1 // pred_region
      %16 = vsyncadd [#allocation4], 0
      %s17 = sshll.u32 %s0, 4
      %s18 = int_to_ptr.hbm [resolvable:$true] %s17
      %s19 = sshll.u32 [#allocation3], 4
      %s20 = int_to_ptr.vmem [resolvable:$true] %s19
      %25 = dma.hbm_to_vmem [thread:$0]  %s18, 512, %s20, [#allocation4], 128, 128, 8
    $region5: #{feed_forward.1} parent=1 // pred_fallthru
      _
    // Predicated region
    $region6: #{feed_forward.1} parent=1 // pred_check
      _
    $region7: #{feed_forward.1} parent=1 // pred_check_branch
      %27 = sbr.rel (0) target = $region9
    $region8: #{feed_forward.1} parent=1 // pred_region
      %29 = vsyncadd [#allocation7], 0
      %s30 = sshll.u32 %s1, 4
      %s31 = int_to_ptr.hbm [resolvable:$true] %s30
      %s32 = sshll.u32 [#allocation6], 4
      %s33 = int_to_ptr.vmem [resolvable:$true] %s32
      %38 = dma.hbm_to_vmem [thread:$0]  %s31, 4096, %s33, [#allocation7], 256, 256, 16
    $region9: #{feed_forward.1} parent=1 // pred_fallthru
      _
    // Predicated region
    $region10: #{feed_forward.1} parent=1 // pred_check
      _
    $region11: #{feed_forward.1} parent=1 // pred_check_branch
      %40 = sbr.rel (0) target = $region13
    $region12: #{feed_forward.1} parent=1 // pred_region
      _
    $region13: #{feed_forward.1} parent=1 // pred_fallthru
      _
    // Predicated region
    $region14: #{feed_forward.1} parent=1 // pred_check
      _
    $region15: #{feed_forward.1} parent=1 // pred_check_branch
      %42 = sbr.rel (0) target = $region17
    $region16: #{feed_forward.1} parent=1 // pred_region
      %44 = vsyncadd [#allocation7], 0
      %s45 = sshll.u32 %s3, 4
      %s46 = int_to_ptr.hbm [resolvable:$true] %s45
      %s47 = sshll.u32 [#allocation8], 4
      %s48 = int_to_ptr.vmem [resolvable:$true] %s47
      %53 = dma.hbm_to_vmem [thread:$0]  %s46, 4096, %s48, [#allocation7], 128, 128, 8
    $region17: #{feed_forward.1} parent=1 // pred_fallthru
      _
    // Predicated region
    $region18: #{feed_forward.1} parent=1 // pred_check
      _
    $region19: #{feed_forward.1} parent=1 // pred_check_branch
      %55 = sbr.rel (0) target = $region21
    $region20: #{feed_forward.1} parent=1 // pred_region
      _
    $region21: #{feed_forward.1} parent=1 // pred_fallthru
      _
    // Predicated region
    $region22: #{feed_forward.1} parent=1 // pred_check
      _
    $region23: #{feed_forward.1} parent=1 // pred_check_branch
      %57 = sbr.rel (0) target = $region25
    $region24: #{feed_forward.1} parent=1 // pred_region
      %59 = dma.done [#allocation4], 512
    $region25: #{feed_forward.1} parent=1 // pred_fallthru
      _
    // Predicated region
    $region26: #{feed_forward.1} parent=1 // pred_check
      _
    $region27: #{feed_forward.1} parent=1 // pred_check_branch
      %61 = sbr.rel (0) target = $region29
    $region28: #{feed_forward.1} parent=1 // pred_region
      %63 = dma.done [#allocation7], 4096
    $region29: #{feed_forward.1} parent=1 // pred_fallthru
      _
    // Predicated region
    $region30: #{feed_forward.1} parent=1 // pred_check
      _
    $region31: #{feed_forward.1} parent=1 // pred_check_branch
      %65 = sbr.rel (0) target = $region33
    $region32: #{feed_forward.1} parent=1 // pred_region
      %67 = dma.done [#allocation7], 4096
    $region33: #{feed_forward.1} parent=1 // pred_fallthru
      _
    %p68 = scmp.eq.s32.totalorder 0, 0
    // Predicated region
    $region34: #{feed_forward.1} parent=1 // pred_check
      %p69 = pneg %p68
    $region35: #{feed_forward.1} parent=1 // pred_check_branch
      %71 = sbr.rel (%p69) target = $region37
    $region36: #{feed_forward.1} parent=1 // pred_region
      %v72 = vld [vmem:[%s4] sm:$0x1]
      %v74 = vperm.slane %v72, 0
      %76 = vst [vmem:[#allocation2] sm:$0xff] %v74
      %77 = vst [vmem:[#allocation2 + $0x8] sm:$0xff] %v74
      %78 = vst [vmem:[#allocation2 + $0x10] sm:$0xff] %v74
      %79 = vst [vmem:[#allocation2 + $0x18] sm:$0xff] %v74
    $region37: #{feed_forward.1} parent=1 // pred_fallthru
      _
    %v80 = vld [vmem:[#allocation3] sm:$0xff]
    %v81 = vld [vmem:[#allocation3 + $0x8] sm:$0xff]
    %v82 = vld [vmem:[#allocation3 + $0x10] sm:$0xff]
    %v83 = vld [vmem:[#allocation3 + $0x18] sm:$0xff]
    %v84 = vld [vmem:[#allocation6] sm:$0xff]
    %v85 = vld [vmem:[#allocation6 + $0x8] sm:$0xff]
    %v86 = vld [vmem:[#allocation6 + $0x10] sm:$0xff]
    %v87 = vld [vmem:[#allocation6 + $0x18] sm:$0xff]
    %v88 = vld [vmem:[#allocation6 + $0x20] sm:$0xff]
    %v89 = vld [vmem:[#allocation6 + $0x28] sm:$0xff]
    %v90 = vld [vmem:[#allocation6 + $0x30] sm:$0xff]
    %v91 = vld [vmem:[#allocation6 + $0x38] sm:$0xff]
    %v92 = vld [vmem:[#allocation6 + $0x40] sm:$0xff]
    %v93 = vld [vmem:[#allocation6 + $0x48] sm:$0xff]
    %v94 = vld [vmem:[#allocation6 + $0x50] sm:$0xff]
    %v95 = vld [vmem:[#allocation6 + $0x58] sm:$0xff]
    %v96 = vld [vmem:[#allocation6 + $0x60] sm:$0xff]
    %v97 = vld [vmem:[#allocation6 + $0x68] sm:$0xff]
    %v98 = vld [vmem:[#allocation6 + $0x70] sm:$0xff]
    %v99 = vld [vmem:[#allocation6 + $0x78] sm:$0xff]
    %v100 = vld [vmem:[#allocation6 + $0x80] sm:$0xff]
    %v101 = vld [vmem:[#allocation6 + $0x88] sm:$0xff]
    %v102 = vld [vmem:[#allocation6 + $0x90] sm:$0xff]
    %v103 = vld [vmem:[#allocation6 + $0x98] sm:$0xff]
    %v104 = vld [vmem:[#allocation6 + $0xa0] sm:$0xff]
    %v105 = vld [vmem:[#allocation6 + $0xa8] sm:$0xff]
    %v106 = vld [vmem:[#allocation6 + $0xb0] sm:$0xff]
    %v107 = vld [vmem:[#allocation6 + $0xb8] sm:$0xff]
    %v108 = vld [vmem:[#allocation6 + $0xc0] sm:$0xff]
    %v109 = vld [vmem:[#allocation6 + $0xc8] sm:$0xff]
    %v110 = vld [vmem:[#allocation6 + $0xd0] sm:$0xff]
    %v111 = vld [vmem:[#allocation6 + $0xd8] sm:$0xff]
    %v112 = vld [vmem:[#allocation6 + $0xe0] sm:$0xff]
    %v113 = vld [vmem:[#allocation6 + $0xe8] sm:$0xff]
    %v114 = vld [vmem:[#allocation6 + $0xf0] sm:$0xff]
    %v115 = vld [vmem:[#allocation6 + $0xf8] sm:$0xff]
    %v116 = vld [vmem:[%s2] sm:$0x3]
    %v118 = vperm.slane %v116, 0
    %v119 = vperm.slane %v116, 1
    %122 = vmatpush.msra.mxu0 %v114
    %123 = vmatpush.msra.mxu0 %v112
    %124 = vmatpush.msra.mxu0 %v110
    %125 = vmatpush.msra.mxu0 %v108
    %126 = vmatpush.msra.mxu0 %v106
    %127 = vmatpush.msra.mxu0 %v104
    %128 = vmatpush.msra.mxu0 %v102
    %129 = vmatpush.msra.mxu0 %v100
    %130 = vmatpush.msra.mxu0 %v98
    %131 = vmatpush.msra.mxu0 %v96
    %132 = vmatpush.msra.mxu0 %v94
    %133 = vmatpush.msra.mxu0 %v92
    %134 = vmatpush.msra.mxu0 %v90
    %135 = vmatpush.msra.mxu0 %v88
    %136 = vmatpush.msra.mxu0 %v86
    %137 = vmatpush.msra.mxu0 %v84
    %138 = vmatmul.f32.gmra.mxu0 %v80
    %v139 = vpop.f32.mrf.mxu0
    %v140 = vadd.f32 %v118, %v139
    %141 = vmatmul.f32.gmra.mxu0 %v81
    %v142 = vpop.f32.mrf.mxu0
    %v143 = vadd.f32 %v118, %v142
    %144 = vmatmul.f32.gmra.mxu0 %v82
    %v145 = vpop.f32.mrf.mxu0
    %v146 = vadd.f32 %v118, %v145
    %147 = vmatmul.f32.gmra.mxu0 %v83
    %v148 = vpop.f32.mrf.mxu0
    %v149 = vadd.f32 %v118, %v148
    %150 = vdwg.mxu0
    %151 = vmatpush.msra.mxu0 %v115
    %152 = vmatpush.msra.mxu0 %v113
    %153 = vmatpush.msra.mxu0 %v111
    %154 = vmatpush.msra.mxu0 %v109
    %155 = vmatpush.msra.mxu0 %v107
    %156 = vmatpush.msra.mxu0 %v105
    %157 = vmatpush.msra.mxu0 %v103
    %158 = vmatpush.msra.mxu0 %v101
    %159 = vmatpush.msra.mxu0 %v99
    %160 = vmatpush.msra.mxu0 %v97
    %161 = vmatpush.msra.mxu0 %v95
    %162 = vmatpush.msra.mxu0 %v93
    %163 = vmatpush.msra.mxu0 %v91
    %164 = vmatpush.msra.mxu0 %v89
    %165 = vmatpush.msra.mxu0 %v87
    %166 = vmatpush.msra.mxu0 %v85
    %167 = vmatmul.f32.gmra.mxu0 %v80
    %v168 = vpop.f32.mrf.mxu0
    %v169 = vadd.f32 %v119, %v168
    %170 = vmatmul.f32.gmra.mxu0 %v81
    %v171 = vpop.f32.mrf.mxu0
    %v172 = vadd.f32 %v119, %v171
    %173 = vmatmul.f32.gmra.mxu0 %v82
    %v174 = vpop.f32.mrf.mxu0
    %v175 = vadd.f32 %v119, %v174
    %176 = vmatmul.f32.gmra.mxu0 %v83
    %v177 = vpop.f32.mrf.mxu0
    %v178 = vadd.f32 %v119, %v177
    %179 = vdwg.mxu0
    %v180 = vmul.f32 %v140, 0.5
    %v181 = vmul.f32 %v169, 0.5
    %v182 = vmul.f32 %v143, 0.5
    %v183 = vmul.f32 %v172, 0.5
    %v184 = vmul.f32 %v146, 0.5
    %v185 = vmul.f32 %v175, 0.5
    %v186 = vmul.f32 %v149, 0.5
    %v187 = vmul.f32 %v178, 0.5
    %v188 = vmul.f32 %v140, 0.70710677
    %v189 = vmul.f32 %v169, 0.70710677
    %v190 = vmul.f32 %v143, 0.70710677
    %v191 = vmul.f32 %v172, 0.70710677
    %v192 = vmul.f32 %v146, 0.70710677
    %v193 = vmul.f32 %v175, 0.70710677
    %v194 = vmul.f32 %v149, 0.70710677
    %v195 = vmul.f32 %v178, 0.70710677
    %v196 = vmul.f32 %v188, %v188
    %v197 = vmin.f32 16.0, %v196
    %v198 = vmul.f32 %v197, 2.1237322e-06
    %v199 = vadd.f32 %v198, 0.00028619796
    %v200 = vmul.f32 %v197, %v199
    %v201 = vadd.f32 %v200, 0.0036580483
    %v202 = vmul.f32 %v197, %v201
    %v203 = vadd.f32 %v202, 0.05243302
    %v204 = vmul.f32 %v197, %v203
    %v205 = vadd.f32 %v204, 0.18741608
    %v206 = vmul.f32 %v197, %v205
    %v207 = vadd.f32 %v206, 1.1283791
    %v208 = vmul.f32 %v188, %v207
    %v209 = vmul.f32 %v197, 3.8918573e-05
    %v210 = vadd.f32 %v209, 0.001143296
    %v211 = vmul.f32 %v197, %v210
    %v212 = vadd.f32 %v211, 0.014752088
    %v213 = vmul.f32 %v197, %v212
    %v214 = vadd.f32 %v213, 0.112945676
    %v215 = vmul.f32 %v197, %v214
    %v216 = vadd.f32 %v215, 0.4994258
    %v217 = vmul.f32 %v197, %v216
    %v218 = vadd.f32 %v217, 1.0
    %v219 = vrcp.pop %v218
    %v220 = vmul.f32 %v218, %v219
    %v221 = vsub.f32 1.0, %v220
    %v222 = vmul.f32 %v219, %v221
    %v223 = vadd.f32 %v219, %v222
    %vm224 = vweird.f32 %v218
    %vm225 = vweird.f32 %v219
    %vm226 = vmor %vm224, %vm225
    %v227 = vsel %vm226, %v219, %v223
    %v228 = vand.u32 2147483647, %v218
    %vm229 = vcmp.eq.f32.partialorder %v228, 8.507059e+37
    %v230 = vand.u32 %v218, 2147483648
    %v231 = vor.u32 1.1754944e-38, %v230
    %v232 = vsel %vm229, %v231, %v227
    %v233 = vmul.f32 %v208, %v232
    %v234 = vmin.f32 %v233, 1.0
    %v235 = vmax.f32 %v234, -1.0
    %v236 = vmul.f32 %v189, %v189
    %v237 = vmin.f32 16.0, %v236
    %v238 = vmul.f32 %v237, 2.1237322e-06
    %v239 = vadd.f32 %v238, 0.00028619796
    %v240 = vmul.f32 %v237, %v239
    %v241 = vadd.f32 %v240, 0.0036580483
    %v242 = vmul.f32 %v237, %v241
    %v243 = vadd.f32 %v242, 0.05243302
    %v244 = vmul.f32 %v237, %v243
    %v245 = vadd.f32 %v244, 0.18741608
    %v246 = vmul.f32 %v237, %v245
    %v247 = vadd.f32 %v246, 1.1283791
    %v248 = vmul.f32 %v189, %v247
    %v249 = vmul.f32 %v237, 3.8918573e-05
    %v250 = vadd.f32 %v249, 0.001143296
    %v251 = vmul.f32 %v237, %v250
    %v252 = vadd.f32 %v251, 0.014752088
    %v253 = vmul.f32 %v237, %v252
    %v254 = vadd.f32 %v253, 0.112945676
    %v255 = vmul.f32 %v237, %v254
    %v256 = vadd.f32 %v255, 0.4994258
    %v257 = vmul.f32 %v237, %v256
    %v258 = vadd.f32 %v257, 1.0
    %v259 = vrcp.pop %v258
    %v260 = vmul.f32 %v258, %v259
    %v261 = vsub.f32 1.0, %v260
    %v262 = vmul.f32 %v259, %v261
    %v263 = vadd.f32 %v259, %v262
    %vm264 = vweird.f32 %v258
    %vm265 = vweird.f32 %v259
    %vm266 = vmor %vm264, %vm265
    %v267 = vsel %vm266, %v259, %v263
    %v268 = vand.u32 2147483647, %v258
    %vm269 = vcmp.eq.f32.partialorder %v268, 8.507059e+37
    %v270 = vand.u32 %v258, 2147483648
    %v271 = vor.u32 1.1754944e-38, %v270
    %v272 = vsel %vm269, %v271, %v267
    %v273 = vmul.f32 %v248, %v272
    %v274 = vmin.f32 %v273, 1.0
    %v275 = vmax.f32 %v274, -1.0
    %v276 = vmul.f32 %v190, %v190
    %v277 = vmin.f32 16.0, %v276
    %v278 = vmul.f32 %v277, 2.1237322e-06
    %v279 = vadd.f32 %v278, 0.00028619796
    %v280 = vmul.f32 %v277, %v279
    %v281 = vadd.f32 %v280, 0.0036580483
    %v282 = vmul.f32 %v277, %v281
    %v283 = vadd.f32 %v282, 0.05243302
    %v284 = vmul.f32 %v277, %v283
    %v285 = vadd.f32 %v284, 0.18741608
    %v286 = vmul.f32 %v277, %v285
    %v287 = vadd.f32 %v286, 1.1283791
    %v288 = vmul.f32 %v190, %v287
    %v289 = vmul.f32 %v277, 3.8918573e-05
    %v290 = vadd.f32 %v289, 0.001143296
    %v291 = vmul.f32 %v277, %v290
    %v292 = vadd.f32 %v291, 0.014752088
    %v293 = vmul.f32 %v277, %v292
    %v294 = vadd.f32 %v293, 0.112945676
    %v295 = vmul.f32 %v277, %v294
    %v296 = vadd.f32 %v295, 0.4994258
    %v297 = vmul.f32 %v277, %v296
    %v298 = vadd.f32 %v297, 1.0
    %v299 = vrcp.pop %v298
    %v300 = vmul.f32 %v298, %v299
    %v301 = vsub.f32 1.0, %v300
    %v302 = vmul.f32 %v299, %v301
    %v303 = vadd.f32 %v299, %v302
    %vm304 = vweird.f32 %v298
    %vm305 = vweird.f32 %v299
    %vm306 = vmor %vm304, %vm305
    %v307 = vsel %vm306, %v299, %v303
    %v308 = vand.u32 2147483647, %v298
    %vm309 = vcmp.eq.f32.partialorder %v308, 8.507059e+37
    %v310 = vand.u32 %v298, 2147483648
    %v311 = vor.u32 1.1754944e-38, %v310
    %v312 = vsel %vm309, %v311, %v307
    %v313 = vmul.f32 %v288, %v312
    %v314 = vmin.f32 %v313, 1.0
    %v315 = vmax.f32 %v314, -1.0
    %v316 = vmul.f32 %v191, %v191
    %v317 = vmin.f32 16.0, %v316
    %v318 = vmul.f32 %v317, 2.1237322e-06
    %v319 = vadd.f32 %v318, 0.00028619796
    %v320 = vmul.f32 %v317, %v319
    %v321 = vadd.f32 %v320, 0.0036580483
    %v322 = vmul.f32 %v317, %v321
    %v323 = vadd.f32 %v322, 0.05243302
    %v324 = vmul.f32 %v317, %v323
    %v325 = vadd.f32 %v324, 0.18741608
    %v326 = vmul.f32 %v317, %v325
    %v327 = vadd.f32 %v326, 1.1283791
    %v328 = vmul.f32 %v191, %v327
    %v329 = vmul.f32 %v317, 3.8918573e-05
    %v330 = vadd.f32 %v329, 0.001143296
    %v331 = vmul.f32 %v317, %v330
    %v332 = vadd.f32 %v331, 0.014752088
    %v333 = vmul.f32 %v317, %v332
    %v334 = vadd.f32 %v333, 0.112945676
    %v335 = vmul.f32 %v317, %v334
    %v336 = vadd.f32 %v335, 0.4994258
    %v337 = vmul.f32 %v317, %v336
    %v338 = vadd.f32 %v337, 1.0
    %v339 = vrcp.pop %v338
    %v340 = vmul.f32 %v338, %v339
    %v341 = vsub.f32 1.0, %v340
    %v342 = vmul.f32 %v339, %v341
    %v343 = vadd.f32 %v339, %v342
    %vm344 = vweird.f32 %v338
    %vm345 = vweird.f32 %v339
    %vm346 = vmor %vm344, %vm345
    %v347 = vsel %vm346, %v339, %v343
    %v348 = vand.u32 2147483647, %v338
    %vm349 = vcmp.eq.f32.partialorder %v348, 8.507059e+37
    %v350 = vand.u32 %v338, 2147483648
    %v351 = vor.u32 1.1754944e-38, %v350
    %v352 = vsel %vm349, %v351, %v347
    %v353 = vmul.f32 %v328, %v352
    %v354 = vmin.f32 %v353, 1.0
    %v355 = vmax.f32 %v354, -1.0
    %v356 = vmul.f32 %v192, %v192
    %v357 = vmin.f32 16.0, %v356
    %v358 = vmul.f32 %v357, 2.1237322e-06
    %v359 = vadd.f32 %v358, 0.00028619796
    %v360 = vmul.f32 %v357, %v359
    %v361 = vadd.f32 %v360, 0.0036580483
    %v362 = vmul.f32 %v357, %v361
    %v363 = vadd.f32 %v362, 0.05243302
    %v364 = vmul.f32 %v357, %v363
    %v365 = vadd.f32 %v364, 0.18741608
    %v366 = vmul.f32 %v357, %v365
    %v367 = vadd.f32 %v366, 1.1283791
    %v368 = vmul.f32 %v192, %v367
    %v369 = vmul.f32 %v357, 3.8918573e-05
    %v370 = vadd.f32 %v369, 0.001143296
    %v371 = vmul.f32 %v357, %v370
    %v372 = vadd.f32 %v371, 0.014752088
    %v373 = vmul.f32 %v357, %v372
    %v374 = vadd.f32 %v373, 0.112945676
    %v375 = vmul.f32 %v357, %v374
    %v376 = vadd.f32 %v375, 0.4994258
    %v377 = vmul.f32 %v357, %v376
    %v378 = vadd.f32 %v377, 1.0
    %v379 = vrcp.pop %v378
    %v380 = vmul.f32 %v378, %v379
    %v381 = vsub.f32 1.0, %v380
    %v382 = vmul.f32 %v379, %v381
    %v383 = vadd.f32 %v379, %v382
    %vm384 = vweird.f32 %v378
    %vm385 = vweird.f32 %v379
    %vm386 = vmor %vm384, %vm385
    %v387 = vsel %vm386, %v379, %v383
    %v388 = vand.u32 2147483647, %v378
    %vm389 = vcmp.eq.f32.partialorder %v388, 8.507059e+37
    %v390 = vand.u32 %v378, 2147483648
    %v391 = vor.u32 1.1754944e-38, %v390
    %v392 = vsel %vm389, %v391, %v387
    %v393 = vmul.f32 %v368, %v392
    %v394 = vmin.f32 %v393, 1.0
    %v395 = vmax.f32 %v394, -1.0
    %v396 = vmul.f32 %v193, %v193
    %v397 = vmin.f32 16.0, %v396
    %v398 = vmul.f32 %v397, 2.1237322e-06
    %v399 = vadd.f32 %v398, 0.00028619796
    %v400 = vmul.f32 %v397, %v399
    %v401 = vadd.f32 %v400, 0.0036580483
    %v402 = vmul.f32 %v397, %v401
    %v403 = vadd.f32 %v402, 0.05243302
    %v404 = vmul.f32 %v397, %v403
    %v405 = vadd.f32 %v404, 0.18741608
    %v406 = vmul.f32 %v397, %v405
    %v407 = vadd.f32 %v406, 1.1283791
    %v408 = vmul.f32 %v193, %v407
    %v409 = vmul.f32 %v397, 3.8918573e-05
    %v410 = vadd.f32 %v409, 0.001143296
    %v411 = vmul.f32 %v397, %v410
    %v412 = vadd.f32 %v411, 0.014752088
    %v413 = vmul.f32 %v397, %v412
    %v414 = vadd.f32 %v413, 0.112945676
    %v415 = vmul.f32 %v397, %v414
    %v416 = vadd.f32 %v415, 0.4994258
    %v417 = vmul.f32 %v397, %v416
    %v418 = vadd.f32 %v417, 1.0
    %v419 = vrcp.pop %v418
    %v420 = vmul.f32 %v418, %v419
    %v421 = vsub.f32 1.0, %v420
    %v422 = vmul.f32 %v419, %v421
    %v423 = vadd.f32 %v419, %v422
    %vm424 = vweird.f32 %v418
    %vm425 = vweird.f32 %v419
    %vm426 = vmor %vm424, %vm425
    %v427 = vsel %vm426, %v419, %v423
    %v428 = vand.u32 2147483647, %v418
    %vm429 = vcmp.eq.f32.partialorder %v428, 8.507059e+37
    %v430 = vand.u32 %v418, 2147483648
    %v431 = vor.u32 1.1754944e-38, %v430
    %v432 = vsel %vm429, %v431, %v427
    %v433 = vmul.f32 %v408, %v432
    %v434 = vmin.f32 %v433, 1.0
    %v435 = vmax.f32 %v434, -1.0
    %v436 = vmul.f32 %v194, %v194
    %v437 = vmin.f32 16.0, %v436
    %v438 = vmul.f32 %v437, 2.1237322e-06
    %v439 = vadd.f32 %v438, 0.00028619796
    %v440 = vmul.f32 %v437, %v439
    %v441 = vadd.f32 %v440, 0.0036580483
    %v442 = vmul.f32 %v437, %v441
    %v443 = vadd.f32 %v442, 0.05243302
    %v444 = vmul.f32 %v437, %v443
    %v445 = vadd.f32 %v444, 0.18741608
    %v446 = vmul.f32 %v437, %v445
    %v447 = vadd.f32 %v446, 1.1283791
    %v448 = vmul.f32 %v194, %v447
    %v449 = vmul.f32 %v437, 3.8918573e-05
    %v450 = vadd.f32 %v449, 0.001143296
    %v451 = vmul.f32 %v437, %v450
    %v452 = vadd.f32 %v451, 0.014752088
    %v453 = vmul.f32 %v437, %v452
    %v454 = vadd.f32 %v453, 0.112945676
    %v455 = vmul.f32 %v437, %v454
    %v456 = vadd.f32 %v455, 0.4994258
    %v457 = vmul.f32 %v437, %v456
    %v458 = vadd.f32 %v457, 1.0
    %v459 = vrcp.pop %v458
    %v460 = vmul.f32 %v458, %v459
    %v461 = vsub.f32 1.0, %v460
    %v462 = vmul.f32 %v459, %v461
    %v463 = vadd.f32 %v459, %v462
    %vm464 = vweird.f32 %v458
    %vm465 = vweird.f32 %v459
    %vm466 = vmor %vm464, %vm465
    %v467 = vsel %vm466, %v459, %v463
    %v468 = vand.u32 2147483647, %v458
    %vm469 = vcmp.eq.f32.partialorder %v468, 8.507059e+37
    %v470 = vand.u32 %v458, 2147483648
    %v471 = vor.u32 1.1754944e-38, %v470
    %v472 = vsel %vm469, %v471, %v467
    %v473 = vmul.f32 %v448, %v472
    %v474 = vmin.f32 %v473, 1.0
    %v475 = vmax.f32 %v474, -1.0
    %v476 = vmul.f32 %v195, %v195
    %v477 = vmin.f32 16.0, %v476
    %v478 = vmul.f32 %v477, 2.1237322e-06
    %v479 = vadd.f32 %v478, 0.00028619796
    %v480 = vmul.f32 %v477, %v479
    %v481 = vadd.f32 %v480, 0.0036580483
    %v482 = vmul.f32 %v477, %v481
    %v483 = vadd.f32 %v482, 0.05243302
    %v484 = vmul.f32 %v477, %v483
    %v485 = vadd.f32 %v484, 0.18741608
    %v486 = vmul.f32 %v477, %v485
    %v487 = vadd.f32 %v486, 1.1283791
    %v488 = vmul.f32 %v195, %v487
    %v489 = vmul.f32 %v477, 3.8918573e-05
    %v490 = vadd.f32 %v489, 0.001143296
    %v491 = vmul.f32 %v477, %v490
    %v492 = vadd.f32 %v491, 0.014752088
    %v493 = vmul.f32 %v477, %v492
    %v494 = vadd.f32 %v493, 0.112945676
    %v495 = vmul.f32 %v477, %v494
    %v496 = vadd.f32 %v495, 0.4994258
    %v497 = vmul.f32 %v477, %v496
    %v498 = vadd.f32 %v497, 1.0
    %v499 = vrcp.pop %v498
    %v500 = vmul.f32 %v498, %v499
    %v501 = vsub.f32 1.0, %v500
    %v502 = vmul.f32 %v499, %v501
    %v503 = vadd.f32 %v499, %v502
    %vm504 = vweird.f32 %v498
    %vm505 = vweird.f32 %v499
    %vm506 = vmor %vm504, %vm505
    %v507 = vsel %vm506, %v499, %v503
    %v508 = vand.u32 2147483647, %v498
    %vm509 = vcmp.eq.f32.partialorder %v508, 8.507059e+37
    %v510 = vand.u32 %v498, 2147483648
    %v511 = vor.u32 1.1754944e-38, %v510
    %v512 = vsel %vm509, %v511, %v507
    %v513 = vmul.f32 %v488, %v512
    %v514 = vmin.f32 %v513, 1.0
    %v515 = vmax.f32 %v514, -1.0
    %v516 = vadd.f32 %v235, 1.0
    %v517 = vadd.f32 %v275, 1.0
    %v518 = vadd.f32 %v315, 1.0
    %v519 = vadd.f32 %v355, 1.0
    %v520 = vadd.f32 %v395, 1.0
    %v521 = vadd.f32 %v435, 1.0
    %v522 = vadd.f32 %v475, 1.0
    %v523 = vadd.f32 %v515, 1.0
    %v524 = vmul.f32 %v180, %v516
    %v525 = vmul.f32 %v181, %v517
    %v526 = vmul.f32 %v182, %v518
    %v527 = vmul.f32 %v183, %v519
    %v528 = vmul.f32 %v184, %v520
    %v529 = vmul.f32 %v185, %v521
    %v530 = vmul.f32 %v186, %v522
    %v531 = vmul.f32 %v187, %v523
    %v532 = vld [vmem:[#allocation2] sm:$0xff]
    %v533 = vld [vmem:[#allocation2 + $0x8] sm:$0xff]
    %v534 = vld [vmem:[#allocation2 + $0x10] sm:$0xff]
    %v535 = vld [vmem:[#allocation2 + $0x18] sm:$0xff]
    %v536 = vld [vmem:[#allocation8] sm:$0xff]
    %v537 = vld [vmem:[#allocation8 + $0x8] sm:$0xff]
    %v538 = vld [vmem:[#allocation8 + $0x10] sm:$0xff]
    %v539 = vld [vmem:[#allocation8 + $0x18] sm:$0xff]
    %v540 = vld [vmem:[#allocation8 + $0x20] sm:$0xff]
    %v541 = vld [vmem:[#allocation8 + $0x28] sm:$0xff]
    %v542 = vld [vmem:[#allocation8 + $0x30] sm:$0xff]
    %v543 = vld [vmem:[#allocation8 + $0x38] sm:$0xff]
    %v544 = vld [vmem:[#allocation8 + $0x40] sm:$0xff]
    %v545 = vld [vmem:[#allocation8 + $0x48] sm:$0xff]
    %v546 = vld [vmem:[#allocation8 + $0x50] sm:$0xff]
    %v547 = vld [vmem:[#allocation8 + $0x58] sm:$0xff]
    %v548 = vld [vmem:[#allocation8 + $0x60] sm:$0xff]
    %v549 = vld [vmem:[#allocation8 + $0x68] sm:$0xff]
    %v550 = vld [vmem:[#allocation8 + $0x70] sm:$0xff]
    %v551 = vld [vmem:[#allocation8 + $0x78] sm:$0xff]
    %v552 = vld [vmem:[#allocation8 + $0x80] sm:$0xff]
    %v553 = vld [vmem:[#allocation8 + $0x88] sm:$0xff]
    %v554 = vld [vmem:[#allocation8 + $0x90] sm:$0xff]
    %v555 = vld [vmem:[#allocation8 + $0x98] sm:$0xff]
    %v556 = vld [vmem:[#allocation8 + $0xa0] sm:$0xff]
    %v557 = vld [vmem:[#allocation8 + $0xa8] sm:$0xff]
    %v558 = vld [vmem:[#allocation8 + $0xb0] sm:$0xff]
    %v559 = vld [vmem:[#allocation8 + $0xb8] sm:$0xff]
    %v560 = vld [vmem:[#allocation8 + $0xc0] sm:$0xff]
    %v561 = vld [vmem:[#allocation8 + $0xc8] sm:$0xff]
    %v562 = vld [vmem:[#allocation8 + $0xd0] sm:$0xff]
    %v563 = vld [vmem:[#allocation8 + $0xd8] sm:$0xff]
    %v564 = vld [vmem:[#allocation8 + $0xe0] sm:$0xff]
    %v565 = vld [vmem:[#allocation8 + $0xe8] sm:$0xff]
    %v566 = vld [vmem:[#allocation8 + $0xf0] sm:$0xff]
    %v567 = vld [vmem:[#allocation8 + $0xf8] sm:$0xff]
    %568 = vmatpush.msra.mxu0 %v551
    %569 = vmatpush.msra.mxu0 %v550
    %570 = vmatpush.msra.mxu0 %v549
    %571 = vmatpush.msra.mxu0 %v548
    %572 = vmatpush.msra.mxu0 %v547
    %573 = vmatpush.msra.mxu0 %v546
    %574 = vmatpush.msra.mxu0 %v545
    %575 = vmatpush.msra.mxu0 %v544
    %576 = vmatpush.msra.mxu0 %v543
    %577 = vmatpush.msra.mxu0 %v542
    %578 = vmatpush.msra.mxu0 %v541
    %579 = vmatpush.msra.mxu0 %v540
    %580 = vmatpush.msra.mxu0 %v539
    %581 = vmatpush.msra.mxu0 %v538
    %582 = vmatpush.msra.mxu0 %v537
    %583 = vmatpush.msra.mxu0 %v536
    %584 = vmatmul.f32.gmra.mxu0 %v524
    %v585 = vpop.f32.mrf.mxu0
    %v586 = vadd.f32 0.0, %v585
    %587 = vmatmul.f32.gmra.mxu0 %v526
    %v588 = vpop.f32.mrf.mxu0
    %v589 = vadd.f32 0.0, %v588
    %590 = vmatmul.f32.gmra.mxu0 %v528
    %v591 = vpop.f32.mrf.mxu0
    %v592 = vadd.f32 0.0, %v591
    %593 = vmatmul.f32.gmra.mxu0 %v530
    %v594 = vpop.f32.mrf.mxu0
    %v595 = vadd.f32 0.0, %v594
    %596 = vdwg.mxu0
    %597 = vmatpush.msra.mxu0 %v567
    %598 = vmatpush.msra.mxu0 %v566
    %599 = vmatpush.msra.mxu0 %v565
    %600 = vmatpush.msra.mxu0 %v564
    %601 = vmatpush.msra.mxu0 %v563
    %602 = vmatpush.msra.mxu0 %v562
    %603 = vmatpush.msra.mxu0 %v561
    %604 = vmatpush.msra.mxu0 %v560
    %605 = vmatpush.msra.mxu0 %v559
    %606 = vmatpush.msra.mxu0 %v558
    %607 = vmatpush.msra.mxu0 %v557
    %608 = vmatpush.msra.mxu0 %v556
    %609 = vmatpush.msra.mxu0 %v555
    %610 = vmatpush.msra.mxu0 %v554
    %611 = vmatpush.msra.mxu0 %v553
    %612 = vmatpush.msra.mxu0 %v552
    %613 = vmatmul.f32.gmra.mxu0 %v525
    %v614 = vpop.f32.mrf.mxu0
    %v615 = vadd.f32 %v586, %v614
    %616 = vmatmul.f32.gmra.mxu0 %v527
    %v617 = vpop.f32.mrf.mxu0
    %v618 = vadd.f32 %v589, %v617
    %619 = vmatmul.f32.gmra.mxu0 %v529
    %v620 = vpop.f32.mrf.mxu0
    %v621 = vadd.f32 %v592, %v620
    %622 = vmatmul.f32.gmra.mxu0 %v531
    %v623 = vpop.f32.mrf.mxu0
    %v624 = vadd.f32 %v595, %v623
    %625 = vdwg.mxu0
    %v626 = vadd.f32 %v532, %v615
    %v627 = vadd.f32 %v533, %v618
    %v628 = vadd.f32 %v534, %v621
    %v629 = vadd.f32 %v535, %v624
    %630 = vst [vmem:[#allocation2] sm:$0xff] %v626
    %631 = vst [vmem:[#allocation2 + $0x8] sm:$0xff] %v627
    %632 = vst [vmem:[#allocation2 + $0x10] sm:$0xff] %v628
    %633 = vst [vmem:[#allocation2 + $0x18] sm:$0xff] %v629
    // Predicated region
    $region38: #{feed_forward.1} parent=1 // pred_check
      %p634 = pneg %p68
    $region39: #{feed_forward.1} parent=1 // pred_check_branch
      %636 = sbr.rel (%p634) target = $region41
    $region40: #{feed_forward.1} parent=1 // pred_region
      %v637 = vld [vmem:[#allocation2] sm:$0xff]
      %v638 = vld [vmem:[#allocation2 + $0x8] sm:$0xff]
      %v639 = vld [vmem:[#allocation2 + $0x10] sm:$0xff]
      %v640 = vld [vmem:[#allocation2 + $0x18] sm:$0xff]
      %641 = vst [vmem:[#allocation9] sm:$0xff] %v637
      %642 = vst [vmem:[#allocation9 + $0x8] sm:$0xff] %v638
      %643 = vst [vmem:[#allocation9 + $0x10] sm:$0xff] %v639
      %644 = vst [vmem:[#allocation9 + $0x18] sm:$0xff] %v640
    $region41: #{feed_forward.1} parent=1 // pred_fallthru
      _
    // Predicated region
    $region42: #{feed_forward.1} parent=1 // pred_check
      _
    $region43: #{feed_forward.1} parent=1 // pred_check_branch
      %646 = sbr.rel (0) target = $region45
    $region44: #{feed_forward.1} parent=1 // pred_region
      %648 = vsyncadd [#allocation5], 0
      %s649 = sshll.u32 [#allocation9], 4
      %s650 = int_to_ptr.vmem [resolvable:$true] %s649
      %s651 = sshll.u32 %s5, 4
      %s652 = int_to_ptr.hbm [resolvable:$true] %s651
      %657 = dma.vmem_to_hbm [thread:$0]  %s650, 512, %s652, [#allocation5], 128, 128, 8
    $region45: #{feed_forward.1} parent=1 // pred_fallthru
      _
    // Predicated region
    $region46: #{feed_forward.1} parent=1 // pred_check
      _
    $region47: #{feed_forward.1} parent=1 // pred_check_branch
      %659 = sbr.rel (0) target = $region49
    $region48: #{feed_forward.1} parent=1 // pred_region
      %661 = dma.done [#allocation5], 512
    $region49: #{feed_forward.1} parent=1 // pred_fallthru
      _
    %662 = vsyncpa [#allocation4], 1
    %663 = vsyncpa [#allocation7], 1
    %664 = vsyncpa [#allocation5], 1

</llo_original>
